<compile_context>
chip_gen: v7x
topology: tpu7x:2x2x1
jax: 0.10.0
libtpu: 0.0.40
codegen_flags: <defaults>
</compile_context>

<pallas_src>
import functools
import math

import jax
import jax.numpy as jnp
from jax.experimental import pallas as pl
from jax.experimental.pallas import tpu as pltpu


_LANE = 128      # lane width (last dim)
_SUBLANE = 8     # sublane width (second-to-last dim)
# Scoped-VMEM limit safe on every chip (v7x physical VMEM is 64 MiB).
_VMEM_LIMIT_BYTES = 48 * 1024 * 1024
# Budget for live (double-buffered) blocks, leaving headroom under the limit.
_BLOCK_BUDGET_BYTES = 36 * 1024 * 1024


def _round_up(x, m):
    return ((x + m - 1) // m) * m


def _choose_block_n(K, Dp, Op, N, itemsize):
    """Largest node tile (multiple of 8) whose double-buffered blocks fit the budget."""
    n_aligned = _round_up(max(N, 1), _SUBLANE)
    for cand in (2048, 1024, 512, 256, 128, 64, 32, 16, 8):
        tn = min(cand, n_aligned)
        bytes_per_step = (
            2 * K * tn * Dp * itemsize      # neighbor_feature tile, double-buffered
            + 2 * tn * Op * itemsize        # output tile, double-buffered
            + 2 * Dp * Op * itemsize        # weight (constant index_map, 2 bufs)
            + 2 * Op * itemsize             # bias
        )
        if bytes_per_step <= _BLOCK_BUDGET_BYTES:
            return tn
    return _SUBLANE


def _neighbor_agg_kernel(*refs, aggr_method, inv_k, has_bias):
    if has_bias:
        nf_ref, w_ref, b_ref, out_ref = refs
    else:
        nf_ref, w_ref, out_ref = refs
        b_ref = None

    nf = nf_ref[...]                         # (K, TN, Dp)
    if aggr_method == "max":
        aggr = jnp.max(nf, axis=0)
    else:                                    # "mean" folded into post-matmul 1/K scale
        aggr = jnp.sum(nf, axis=0)

    hidden = jnp.dot(aggr, w_ref[...], preferred_element_type=jnp.float32)
    if aggr_method == "mean":
        hidden = hidden * inv_k              # scale the (TN, Op) result, not (TN, Dp)
    if has_bias:
        hidden = hidden + b_ref[...].astype(jnp.float32)   # (1, Op) broadcasts cleanly
    out_ref[...] = hidden.astype(out_ref.dtype)


def neighbor_aggregator(neighbor_feature, weight, bias=None, aggr_method="mean"):
    """Pallas forward of NeighborAggregator.

    neighbor_feature: (K, N, D)   weight: (D, O)   bias: (O,) or None
    returns: (N, O) in neighbor_feature.dtype
    """
    if aggr_method not in ("mean", "sum", "max"):
        raise ValueError(
            "Unknown aggr type, expected sum, max, or mean, but got "
            f"{aggr_method}")

    K, N, D = neighbor_feature.shape
    D2, O = weight.shape
    assert D == D2, (D, D2)
    out_dtype = neighbor_feature.dtype
    itemsize = jnp.dtype(out_dtype).itemsize

    # --- lane-dense padding of the feature (D) and output (O) axes ------------
    Dp = _round_up(D, _LANE)
    Op = _round_up(O, _LANE)
    if Dp != D:
        neighbor_feature = jnp.pad(neighbor_feature, ((0, 0), (0, 0), (0, Dp - D)))
        weight = jnp.pad(weight, ((0, Dp - D), (0, 0)))
    if Op != O:
        weight = jnp.pad(weight, ((0, 0), (0, Op - O)))
        if bias is not None:
            bias = jnp.pad(bias, (0, Op - O))

    # --- node tiling -----------------------------------------------------------
    TN = _choose_block_n(K, Dp, Op, N, itemsize)
    num_tiles = pl.cdiv(N, TN)
    Np = num_tiles * TN
    if Np != N:
        # Zero padding on the node axis; padded rows are sliced off below
        # (zeros feed max/sum harmlessly and never reach the real output).
        neighbor_feature = jnp.pad(neighbor_feature, ((0, 0), (0, Np - N), (0, 0)))

    kernel = functools.partial(
        _neighbor_agg_kernel,
        aggr_method=aggr_method,
        inv_k=1.0 / K,
        has_bias=bias is not None,
    )

    in_specs = [
        pl.BlockSpec((K, TN, Dp), lambda i: (0, i, 0)),    # node tile i, full K and D
        pl.BlockSpec((Dp, Op), lambda i: (0, 0)),          # weight stays resident
    ]
    args = [neighbor_feature, weight]
    if bias is not None:
        bias2d = jnp.reshape(bias, (1, Op)).astype(weight.dtype)
        in_specs.append(pl.BlockSpec((1, Op), lambda i: (0, 0)))
        args.append(bias2d)

    out = pl.pallas_call(
        kernel,
        out_shape=jax.ShapeDtypeStruct((Np, Op), out_dtype),
        grid=(num_tiles,),
        in_specs=in_specs,
        out_specs=pl.BlockSpec((TN, Op), lambda i: (i, 0)),
        compiler_params=pltpu.CompilerParams(
            dimension_semantics=("parallel",),
            vmem_limit_bytes=_VMEM_LIMIT_BYTES,
        ),
    )(*args)

    # Strip node / output-lane padding.
    return out[:N, :O]


def kaiming_uniform_like_torch(key, shape, dtype=jnp.float32):
    # torch.nn.init.kaiming_uniform_ defaults: a=0, mode='fan_in',
    # nonlinearity='leaky_relu' -> gain = sqrt(2), fan_in = shape[1]
    fan_in = shape[1]
    gain = math.sqrt(2.0)
    bound = gain * math.sqrt(3.0 / fan_in)
    return jax.random.uniform(key, shape, dtype=dtype, minval=-bound, maxval=bound)


def reference_forward(neighbor_feature, weight, bias=None, aggr_method="mean"):
    if aggr_method == "mean":
        aggr = jnp.mean(neighbor_feature, axis=0)
    elif aggr_method == "sum":
        aggr = jnp.sum(neighbor_feature, axis=0)
    elif aggr_method == "max":
        aggr = jnp.max(neighbor_feature, axis=0)
    else:
        raise ValueError(aggr_method)
    out = aggr @ weight
    if bias is not None:
        out = out + bias
    return out


if __name__ == "__main__":
    key = jax.random.PRNGKey(0)
    k_feat, k_w, k_b = jax.random.split(key, 3)

    # Small shapes consistent with the module's docstring scale:
    # K neighbors, N nodes, input_dim D, output_dim O.
    K, N, D, O = 8, 16, 32, 16

    neighbor_feature = jax.random.normal(k_feat, (K, N, D), dtype=jnp.float32)
    weight = kaiming_uniform_like_torch(k_w, (D, O), dtype=jnp.float32)
    bias = jax.random.normal(k_b, (O,), dtype=jnp.float32)

    # Default config: use_bias=False, aggr_method='mean'.
    out = jax.block_until_ready(
        neighbor_aggregator(neighbor_feature, weight, bias=None, aggr_method="mean"))
    ref = reference_forward(neighbor_feature, weight, None, "mean")
    assert out.shape == (N, O)
    assert jnp.allclose(out, ref, atol=1e-5, rtol=1e-5)

    # Exercise 'sum' and 'max' aggregation paths for parity with the module.
    for m in ("sum", "max"):
        o_m = jax.block_until_ready(
            neighbor_aggregator(neighbor_feature, weight, None, m))
        assert jnp.allclose(o_m, reference_forward(neighbor_feature, weight, None, m),
                            atol=1e-5, rtol=1e-5)

    # Bias path (use_bias=True).
    o_b = jax.block_until_ready(
        neighbor_aggregator(neighbor_feature, weight, bias, "mean"))
    assert jnp.allclose(o_b, reference_forward(neighbor_feature, weight, bias, "mean"),
                        atol=1e-5, rtol=1e-5)

    print("KERNEL_OK")
</pallas_src>

<mosaic_0001>
module attributes {stable_mosaic.version = 11 : i64} {
  func.func @_neighbor_agg_kernel(%arg0: i32, %arg1: memref<8x16x128xf32, #tpu.memory_space<vmem>>, %arg2: memref<128x128xf32, #tpu.memory_space<vmem>>, %arg3: memref<16x128xf32, #tpu.memory_space<vmem>>) attributes {dimension_semantics = [#tpu.dimension_semantics<parallel>], iteration_bounds = array<i64: 1>, scalar_prefetch = 0 : i64, scratch_operands = 0 : i64, tpu.core_type = #tpu.core_type<tc>, window_params = [{transform_indices = @transform_0, window_bounds = array<i64: 8, 16, 128>}, {pipeline_mode = #tpu.pipeline_mode<synchronous>, transform_indices = @transform_1, window_bounds = array<i64: 128, 128>}, {transform_indices = @transform_2, window_bounds = array<i64: 16, 128>}]} {
    %c0 = arith.constant 0 : index
    %c0_0 = arith.constant 0 : index
    %c0_1 = arith.constant 0 : index
    %0 = vector.load %arg1[%c0, %c0_0, %c0_1] : memref<8x16x128xf32, #tpu.memory_space<vmem>>, vector<8x16x128xf32>
    %cst = arith.constant dense<0.000000e+00> : vector<16x128xf32>
    %1 = vector.multi_reduction <add>, %0, %cst [0] : vector<8x16x128xf32> to vector<16x128xf32>
    %c0_2 = arith.constant 0 : index
    %c0_3 = arith.constant 0 : index
    %2 = vector.load %arg2[%c0_2, %c0_3] : memref<128x128xf32, #tpu.memory_space<vmem>>, vector<128x128xf32>
    %cst_4 = arith.constant dense<0.000000e+00> : vector<16x128xf32>
    %3 = tpu.matmul %1, %2, %cst_4 {dimension_numbers = #tpu.dot_dimension_numbers<[1], [0], [0], [1], [0, 0, 1, 1], [], []>} : vector<16x128xf32>, vector<128x128xf32>, vector<16x128xf32> -> vector<16x128xf32>
    %cst_5 = arith.constant 1.250000e-01 : f32
    %4 = vector.broadcast %cst_5 : f32 to vector<16x128xf32>
    %5 = arith.mulf %3, %4 : vector<16x128xf32>
    %c0_6 = arith.constant 0 : index
    %c0_7 = arith.constant 0 : index
    %6 = vector.load %arg3[%c0_6, %c0_7] : memref<16x128xf32, #tpu.memory_space<vmem>>, vector<16x128xf32>
    tpu.vector_store %arg3[%c0_6, %c0_7], %5 {strides = array<i32>} : memref<16x128xf32, #tpu.memory_space<vmem>>, vector<16x128xf32>,
    return
  }
  func.func @transform_0(%arg0: i32) -> (i32, i32, i32) {
    %c0_i32 = arith.constant 0 : i32
    %c0_i32_0 = arith.constant 0 : i32
    %c0_i32_1 = arith.constant 0 : i32
    return %c0_i32, %arg0, %c0_i32_0 : i32, i32, i32
  }
  func.func @transform_1(%arg0: i32) -> (i32, i32) {
    %c0_i32 = arith.constant 0 : i32
    %c0_i32_0 = arith.constant 0 : i32
    %c0_i32_1 = arith.constant 0 : i32
    return %c0_i32, %c0_i32_0 : i32, i32
  }
  func.func @transform_2(%arg0: i32) -> (i32, i32) {
    %c0_i32 = arith.constant 0 : i32
    %c0_i32_0 = arith.constant 0 : i32
    return %arg0, %c0_i32 : i32, i32
  }
}

</mosaic_0001>

<llo_original>
// kernel: tpu_custom_call.1
$region0: #{tpu_custom_call.1}
  #allocation0 [shape = 'u32[]', space=smem, size = 0x4, offset = 0x4, fixed_abs, tag = 'smem constant byte address 0x4 - core index']
  #allocation1 [shape = 'u32[144,128]{1,0:T(1,128)}', space=vmem, size = 0x12000, scoped, tag = 'internal scratch']
  %s0 = inlined_call_operand.hbm [shape: f32[8,16,128], index: 0, kind: input, shape index: {}]
  %s1 = inlined_call_operand.hbm [shape: f32[128,128], index: 1, kind: input, shape index: {}]
  %s2 = inlined_call_operand.hbm [shape: f32[16,128], index: 2, kind: output, shape index: {}]
  %s3 = sld [smem:[#allocation0]]
  $region26: #{tpu_custom_call.1} parent=0
    _
  %s5 = ssub.s32 1, %s3
  %s6 = scalar_select 0, %s5, %s3
  $region1: #{tpu_custom_call.1} parent=0
    #allocation2 [shape = 'u8[65536]{0}', space=vmem, size = 0x10000, scoped, tag = 'input window, operand 0, single buffered']
    #allocation3 [shape = 's32[1]{0}', space=sflag, size = 0x4, scoped, tag = 'scoped memory for tpu_custom_call.1']
    #allocation4 [shape = 's32[1]{0}', space=sflag, size = 0x4, scoped, tag = 'scoped memory for tpu_custom_call.1']
    #allocation5 [shape = 'u8[65536]{0}', space=vmem, size = 0x10000, scoped, tag = 'input window, operand 1, single buffered']
    #allocation6 [shape = 's32[1]{0}', space=sflag, size = 0x4, scoped, tag = 'scoped memory for tpu_custom_call.1']
    #allocation7 [shape = 'u8[8192]{0}', space=vmem, size = 0x2000, scoped, tag = 'output window, operand 0, single buffered']
    %7 = vsyncpa [#allocation3], 0
    %8 = vsyncpa [#allocation6], 0
    %9 = vsyncpa [#allocation4], 0
    // Predicated region
    $region2: #{tpu_custom_call.1} parent=1 // pred_check
      _
    $region3: #{tpu_custom_call.1} parent=1 // pred_check_branch
      %11 = sbr.rel (0) target = $region5
    $region4: #{tpu_custom_call.1} parent=1 // pred_region
      %s13 = ssub.s32 2048, 2048
      %14 = vsyncadd [#allocation3], %s13
      %s15 = sshll.u32 [#allocation2], 4
      %s16 = int_to_ptr.vmem [resolvable:$true] %s15
      %21 = dma.hbm_to_vmem [thread:$0]  %s0, 2048, %s16, [#allocation3], 128, 128, 8
    $region5: #{tpu_custom_call.1} parent=1 // pred_fallthru
      _
    // Predicated region
    $region6: #{tpu_custom_call.1} parent=1 // pred_check
      _
    $region7: #{tpu_custom_call.1} parent=1 // pred_check_branch
      %23 = sbr.rel (0) target = $region9
    $region8: #{tpu_custom_call.1} parent=1 // pred_region
      %s25 = ssub.s32 2048, 2048
      %26 = vsyncadd [#allocation6], %s25
      %s27 = sshll.u32 [#allocation5], 4
      %s28 = int_to_ptr.vmem [resolvable:$true] %s27
      %33 = dma.hbm_to_vmem [thread:$0]  %s1, 2048, %s28, [#allocation6], 128, 128, 8
    $region9: #{tpu_custom_call.1} parent=1 // pred_fallthru
      _
    // Predicated region
    $region10: #{tpu_custom_call.1} parent=1 // pred_check
      _
    $region11: #{tpu_custom_call.1} parent=1 // pred_check_branch
      %35 = sbr.rel (0) target = $region13
    $region12: #{tpu_custom_call.1} parent=1 // pred_region
      %36 = dma.done [#allocation3], 2048
    $region13: #{tpu_custom_call.1} parent=1 // pred_fallthru
      _
    // Predicated region
    $region14: #{tpu_custom_call.1} parent=1 // pred_check
      _
    $region15: #{tpu_custom_call.1} parent=1 // pred_check_branch
      %38 = sbr.rel (0) target = $region17
    $region16: #{tpu_custom_call.1} parent=1 // pred_region
      %39 = dma.done [#allocation6], 2048
    $region17: #{tpu_custom_call.1} parent=1 // pred_fallthru
      _
    %v40 = vld [vmem:[#allocation2] sm:$0xff]
    %v41 = vld [vmem:[#allocation2 + $0x8] sm:$0xff]
    %v42 = vld [vmem:[#allocation2 + $0x10] sm:$0xff]
    %v43 = vld [vmem:[#allocation2 + $0x18] sm:$0xff]
    %v44 = vld [vmem:[#allocation2 + $0x20] sm:$0xff]
    %v45 = vld [vmem:[#allocation2 + $0x28] sm:$0xff]
    %v46 = vld [vmem:[#allocation2 + $0x30] sm:$0xff]
    %v47 = vld [vmem:[#allocation2 + $0x38] sm:$0xff]
    %v48 = vld [vmem:[#allocation2 + $0x40] sm:$0xff]
    %v49 = vld [vmem:[#allocation2 + $0x48] sm:$0xff]
    %v50 = vld [vmem:[#allocation2 + $0x50] sm:$0xff]
    %v51 = vld [vmem:[#allocation2 + $0x58] sm:$0xff]
    %v52 = vld [vmem:[#allocation2 + $0x60] sm:$0xff]
    %v53 = vld [vmem:[#allocation2 + $0x68] sm:$0xff]
    %v54 = vld [vmem:[#allocation2 + $0x70] sm:$0xff]
    %v55 = vld [vmem:[#allocation2 + $0x78] sm:$0xff]
    %v56 = vadd.f32 %v40, %v42
    %v57 = vadd.f32 %v56, %v44
    %v58 = vadd.f32 %v57, %v46
    %v59 = vadd.f32 %v58, %v48
    %v60 = vadd.f32 %v59, %v50
    %v61 = vadd.f32 %v60, %v52
    %v62 = vadd.f32 %v61, %v54
    %v63 = vadd.f32 %v41, %v43
    %v64 = vadd.f32 %v63, %v45
    %v65 = vadd.f32 %v64, %v47
    %v66 = vadd.f32 %v65, %v49
    %v67 = vadd.f32 %v66, %v51
    %v68 = vadd.f32 %v67, %v53
    %v69 = vadd.f32 %v68, %v55
    %v70 = vld [vmem:[#allocation5] sm:$0xff]
    %v71 = vld [vmem:[#allocation5 + $0x8] sm:$0xff]
    %v72 = vld [vmem:[#allocation5 + $0x10] sm:$0xff]
    %v73 = vld [vmem:[#allocation5 + $0x18] sm:$0xff]
    %v74 = vld [vmem:[#allocation5 + $0x20] sm:$0xff]
    %v75 = vld [vmem:[#allocation5 + $0x28] sm:$0xff]
    %v76 = vld [vmem:[#allocation5 + $0x30] sm:$0xff]
    %v77 = vld [vmem:[#allocation5 + $0x38] sm:$0xff]
    %v78 = vld [vmem:[#allocation5 + $0x40] sm:$0xff]
    %v79 = vld [vmem:[#allocation5 + $0x48] sm:$0xff]
    %v80 = vld [vmem:[#allocation5 + $0x50] sm:$0xff]
    %v81 = vld [vmem:[#allocation5 + $0x58] sm:$0xff]
    %v82 = vld [vmem:[#allocation5 + $0x60] sm:$0xff]
    %v83 = vld [vmem:[#allocation5 + $0x68] sm:$0xff]
    %v84 = vld [vmem:[#allocation5 + $0x70] sm:$0xff]
    %v85 = vld [vmem:[#allocation5 + $0x78] sm:$0xff]
    %86 = vmatprep.subr.mxu0 0.0
    %87 = vmatpush1.msra.mxu0 %v70
    %88 = vmatprep.subr.mxu0 0.0
    %89 = vmatpush1.msra.mxu0 %v71
    %90 = vmatprep.subr.mxu0 0.0
    %91 = vmatpush1.msra.mxu0 %v72
    %92 = vmatprep.subr.mxu0 0.0
    %93 = vmatpush1.msra.mxu0 %v73
    %94 = vmatprep.subr.mxu0 0.0
    %95 = vmatpush1.msra.mxu0 %v74
    %96 = vmatprep.subr.mxu0 0.0
    %97 = vmatpush1.msra.mxu0 %v75
    %98 = vmatprep.subr.mxu0 0.0
    %99 = vmatpush1.msra.mxu0 %v76
    %100 = vmatprep.subr.mxu0 0.0
    %101 = vmatpush1.msra.mxu0 %v77
    %102 = vmatprep.subr.mxu0 0.0
    %103 = vmatpush1.msra.mxu0 %v78
    %104 = vmatprep.subr.mxu0 0.0
    %105 = vmatpush1.msra.mxu0 %v79
    %106 = vmatprep.subr.mxu0 0.0
    %107 = vmatpush1.msra.mxu0 %v80
    %108 = vmatprep.subr.mxu0 0.0
    %109 = vmatpush1.msra.mxu0 %v81
    %110 = vmatprep.subr.mxu0 0.0
    %111 = vmatpush1.msra.mxu0 %v82
    %112 = vmatprep.subr.mxu0 0.0
    %113 = vmatpush1.msra.mxu0 %v83
    %114 = vmatprep.subr.mxu0 0.0
    %115 = vmatpush1.msra.mxu0 %v84
    %116 = vmatprep.subr.mxu0 0.0
    %117 = vmatpush1.msra.mxu0 %v85
    %118 = vmatprep.subr.mxu0 0.0
    %119 = vmatpush1.msra.mxu0 0.0
    %120 = vmatprep.subr.mxu0 0.0
    %121 = vmatpush1.msra.mxu0 0.0
    %122 = vmatprep.subr.mxu0 0.0
    %123 = vmatpush1.msra.mxu0 0.0
    %124 = vmatprep.subr.mxu0 0.0
    %125 = vmatpush1.msra.mxu0 0.0
    %126 = vmatprep.subr.mxu0 0.0
    %127 = vmatpush1.msra.mxu0 0.0
    %128 = vmatprep.subr.mxu0 0.0
    %129 = vmatpush1.msra.mxu0 0.0
    %130 = vmatprep.subr.mxu0 0.0
    %131 = vmatpush1.msra.mxu0 0.0
    %132 = vmatprep.subr.mxu0 0.0
    %133 = vmatpush1.msra.mxu0 0.0
    %134 = vmatprep.subr.mxu0 0.0
    %135 = vmatpush1.msra.mxu0 0.0
    %136 = vmatprep.subr.mxu0 0.0
    %137 = vmatpush1.msra.mxu0 0.0
    %138 = vmatprep.subr.mxu0 0.0
    %139 = vmatpush1.msra.mxu0 0.0
    %140 = vmatprep.subr.mxu0 0.0
    %141 = vmatpush1.msra.mxu0 0.0
    %142 = vmatprep.subr.mxu0 0.0
    %143 = vmatpush1.msra.mxu0 0.0
    %144 = vmatprep.subr.mxu0 0.0
    %145 = vmatpush1.msra.mxu0 0.0
    %146 = vmatprep.subr.mxu0 0.0
    %147 = vmatpush1.msra.mxu0 0.0
    %148 = vmatprep.subr.mxu0 0.0
    %149 = vmatpush1.msra.mxu0 0.0
    %150 = vmatprep.mubr.f32.mxu0 0.0
    %151 = vmatmul.mubr.f32.gmra.mrb[0].mxu0 %v62
    %v152 = vpop.f32.mrb[0].mxu0
    %v153 = vadd.f32 0.0, %v152
    %v154 = vpop.f32.mrb[0].mxu0
    %155 = vmatprep.mubr.f32.mxu0 0.0
    %156 = vmatmul.mubr.f32.gmra.mrb[0].mxu0 %v69
    %v157 = vpop.f32.mrb[0].mxu0
    %v158 = vadd.f32 0.0, %v157
    %v159 = vpop.f32.mrb[0].mxu0
    %160 = vdwg.mxu0
    %v161 = vmul.f32 %v153, 0.125
    %v162 = vmul.f32 %v158, 0.125
    %163 = vst [vmem:[#allocation7] sm:$0xff] %v161
    %164 = vst [vmem:[#allocation7 + $0x8] sm:$0xff] %v162
    // Predicated region
    $region18: #{tpu_custom_call.1} parent=1 // pred_check
      _
    $region19: #{tpu_custom_call.1} parent=1 // pred_check_branch
      %166 = sbr.rel (0) target = $region21
    $region20: #{tpu_custom_call.1} parent=1 // pred_region
      %s168 = ssub.s32 256, 256
      %169 = vsyncadd [#allocation4], %s168
      %s170 = sshll.u32 [#allocation7], 4
      %s171 = int_to_ptr.vmem [resolvable:$true] %s170
      %176 = dma.vmem_to_hbm [thread:$0]  %s171, 256, %s2, [#allocation4], 128, 128, 8
    $region21: #{tpu_custom_call.1} parent=1 // pred_fallthru
      _
    // Predicated region
    $region22: #{tpu_custom_call.1} parent=1 // pred_check
      _
    $region23: #{tpu_custom_call.1} parent=1 // pred_check_branch
      %178 = sbr.rel (0) target = $region25
    $region24: #{tpu_custom_call.1} parent=1 // pred_region
      %179 = dma.done [#allocation4], 256
    $region25: #{tpu_custom_call.1} parent=1 // pred_fallthru
      _
    %180 = vsyncpa [#allocation3], 1
    %181 = vsyncpa [#allocation6], 1
    %182 = vsyncpa [#allocation4], 1

</llo_original>
